<compile_context>
chip_gen: v7x
topology: tpu7x:2x2x1
jax: 0.10.0
libtpu: 0.0.40
codegen_flags: <defaults>
</compile_context>

<pallas_src>
import functools

import jax
import jax.numpy as jnp
from jax.experimental import pallas as pl
from jax.experimental.pallas import tpu as pltpu


def _round_up(x, m):
    return ((x + m - 1) // m) * m


@functools.lru_cache(maxsize=1)
def _vmem_limit_bytes():
    """Generation-aware scoped-VMEM limit."""
    try:
        cap = int(pltpu.get_tpu_info().vmem_capacity_bytes)
    except Exception:  # query unavailable -> conservative default
        cap = 64 * 1024 * 1024
    if cap >= 100 * 1024 * 1024:      # v5e / v6e: 128 MiB physical
        return 96 * 1024 * 1024
    return 48 * 1024 * 1024           # v7x: 64 MiB physical


# ----------------------------------------------------------------------------
# Small/medium-N path: whole graph(s) per grid step, Bt graphs batched per step.
# ----------------------------------------------------------------------------
def _graph_conv_small_kernel(a_ref, x_ref, w_ref, o_ref, *, xw_first, flatten,
                             compute_dtype):
    A = a_ref[...]                                   # (Bt, N, N)
    X = x_ref[...]                                   # (Bt, N, Fin)
    W = w_ref[...]                                   # (Fin, Fout_p), compute_dtype
    Bt, N, Fin = X.shape
    Fout_p = W.shape[-1]

    # D_hat = (sum over dim 1 + 1e-5) ** -0.5, kept lane-dense, one cheap
    # transpose to a column vector. No (N, N) A_hat is ever built.
    colsum = jnp.sum(A.astype(jnp.float32), axis=1, keepdims=True)   # (Bt, 1, N)
    d_row = jax.lax.rsqrt(colsum + 1e-05)                            # (Bt, 1, N)
    d_col = jnp.swapaxes(d_row, 1, 2)                                # (Bt, N, 1)

    A_c = A.astype(compute_dtype)

    def times_w(v):
        # (Bt, N, F) @ (F, Fout_p) -> (Bt, N, Fout_p) f32, weight-stationary.
        if flatten:
            F = v.shape[-1]
            out = jnp.dot(v.reshape(Bt * N, F), W,
                          preferred_element_type=jnp.float32)
            return out.reshape(Bt, N, Fout_p)
        Wb = jnp.broadcast_to(W, (Bt,) + W.shape)
        return jnp.einsum("bnf,bfo->bno", v, Wb,
                          preferred_element_type=jnp.float32)

    if xw_first:
        # d ⊙ (A @ ((d⊙X) W)): lane-dense intermediate when Fin is narrow.
        xw = times_w(X.astype(compute_dtype))                        # (Bt, N, Fout_p)
        y = (xw * d_col).astype(compute_dtype)
        out = jnp.einsum("bij,bjf->bif", A_c, y,
                         preferred_element_type=jnp.float32) * d_col
    else:
        y = (X.astype(jnp.float32) * d_col).astype(compute_dtype)
        ax = jnp.einsum("bij,bjf->bif", A_c, y,
                        preferred_element_type=jnp.float32)          # (Bt, N, Fin)
        out = times_w((ax * d_col).astype(compute_dtype))            # (Bt, N, Fout_p)

    o_ref[...] = out.astype(o_ref.dtype)


def _graph_conv_simple(A, X, W_p, *, compute_dtype, out_dtype, vmem_limit):
    B, N, _ = A.shape
    Fin = X.shape[-1]
    Fout_p = W_p.shape[-1]

    # Target ~1024 rows per block (measured ~85% of HBM roofline at >=512 rows),
    # bounded by ~4 MiB of A/X/out per graph-batch, and keep >=2 grid steps so
    # both v7x TensorCores get work.
    per_graph_bytes = 4 * (N * N + N * Fin + N * Fout_p)
    byte_cap = max(1, (4 * 1024 * 1024) // max(per_graph_bytes, 1))
    row_cap = max(1, 1024 // max(N, 1))
    Bt = max(1, min(B, row_cap, byte_cap))
    if B >= 2:
        Bt = min(Bt, max(1, B // 2))

    # Pad B up to a multiple of Bt with zero graphs (sliced off below); keeps
    # the large block size even for prime B.
    Bp = _round_up(B, Bt)
    if Bp != B:
        A_in = jnp.pad(A, ((0, Bp - B), (0, 0), (0, 0)))
        X_in = jnp.pad(X, ((0, Bp - B), (0, 0), (0, 0)))
    else:
        A_in, X_in = A, X

    xw_first = Fout_p <= _round_up(Fin, 128)
    flatten = (N % 8 == 0)           # contiguous sublane concat, no relayout
    kernel = functools.partial(_graph_conv_small_kernel, xw_first=xw_first,
                               flatten=flatten, compute_dtype=compute_dtype)

    out = pl.pallas_call(
        kernel,
        out_shape=jax.ShapeDtypeStruct((Bp, N, Fout_p), out_dtype),
        grid_spec=pltpu.PrefetchScalarGridSpec(
            num_scalar_prefetch=0,
            grid=(Bp // Bt,),
            in_specs=[
                pl.BlockSpec((Bt, N, N), lambda g: (g, 0, 0)),
                pl.BlockSpec((Bt, N, Fin), lambda g: (g, 0, 0)),
                pl.BlockSpec((Fin, Fout_p), lambda g: (0, 0)),
            ],
            out_specs=pl.BlockSpec((Bt, N, Fout_p), lambda g: (g, 0, 0)),
        ),
        compiler_params=pltpu.CompilerParams(
            dimension_semantics=("parallel",),
            vmem_limit_bytes=vmem_limit,
        ),
    )(A_in, X_in, W_p)

    return out[:B] if Bp != B else out


# ----------------------------------------------------------------------------
# Large-N path.
#   Pass 1 : d = rsqrt(colsum(A) + eps)                      (B, 1, Np)
#   Pass 1b: Y = (d ⊙ X) @ W            (only when Fin is narrow / xw_first)
#   Pass 2 : out = d ⊙ (A @ Y)   or   (d ⊙ (A @ (d ⊙ X))) @ W
# ----------------------------------------------------------------------------
def _colsum_rsqrt_kernel(a_ref, d_ref):
    r = pl.program_id(1)

    @pl.when(r == 0)
    def _():
        d_ref[...] = jnp.zeros_like(d_ref)

    d_ref[0] += jnp.sum(a_ref[0].astype(jnp.float32), axis=0, keepdims=True)

    @pl.when(r == pl.num_programs(1) - 1)
    def _():
        d_ref[0] = jax.lax.rsqrt(d_ref[0] + 1e-05)


def _scaled_xw_kernel(d_ref, x_ref, w_ref, y_ref, *, compute_dtype):
    # d_ref: (1,1,ty)  x_ref: (1,ty,Fin)  w_ref: (Fin,Fout_p)  y_ref: (1,ty,Fout_p)
    d_col = jnp.swapaxes(d_ref[0], 0, 1)                              # (ty, 1)
    xs = (x_ref[0].astype(jnp.float32) * d_col).astype(compute_dtype)
    y_ref[0] = jnp.dot(xs, w_ref[...],
                       preferred_element_type=jnp.float32).astype(y_ref.dtype)


def _graph_conv_tiled_kernel_xw(d_ref, a_ref, y_ref, o_ref, acc_ref, *,
                                compute_dtype):
    # d_ref: resident (1,1,Np); a_ref: (1,tm,tk); y_ref: (1,tk,Fout_p)
    i = pl.program_id(1)
    k = pl.program_id(2)
    tm = acc_ref.shape[0]

    @pl.when(k == 0)
    def _():
        acc_ref[...] = jnp.zeros_like(acc_ref)

    A = a_ref[0].astype(compute_dtype)                                # (tm, tk)
    acc_ref[...] += jnp.dot(A, y_ref[0], preferred_element_type=jnp.float32)

    @pl.when(k == pl.num_programs(2) - 1)
    def _():
        istart = pl.multiple_of(i * tm, tm)
        d_i = jnp.swapaxes(d_ref[0, :, pl.ds(istart, tm)], 0, 1)      # (tm, 1)
        o_ref[0] = (acc_ref[...] * d_i).astype(o_ref.dtype)


def _graph_conv_tiled_kernel(d_ref, a_ref, x_ref, w_ref, o_ref, acc_ref, *,
                             compute_dtype):
    # d_ref: resident (1,1,Np); a_ref: (1,tm,tk); x_ref: (1,tk,Fin); w: (Fin,Fout_p)
    i = pl.program_id(1)
    k = pl.program_id(2)
    tm = acc_ref.shape[0]
    tk = a_ref.shape[2]

    @pl.when(k == 0)
    def _():
        acc_ref[...] = jnp.zeros_like(acc_ref)

    A = a_ref[0].astype(compute_dtype)                                # (tm, tk)
    kstart = pl.multiple_of(k * tk, tk)
    d_k = jnp.swapaxes(d_ref[0, :, pl.ds(kstart, tk)], 0, 1)          # (tk, 1)
    Xs = (x_ref[0].astype(jnp.float32) * d_k).astype(compute_dtype)   # (tk, Fin)
    acc_ref[...] += jnp.dot(A, Xs, preferred_element_type=jnp.float32)

    @pl.when(k == pl.num_programs(2) - 1)
    def _():
        istart = pl.multiple_of(i * tm, tm)
        d_i = jnp.swapaxes(d_ref[0, :, pl.ds(istart, tm)], 0, 1)      # (tm, 1)
        y = (acc_ref[...] * d_i).astype(compute_dtype)
        o_ref[0] = jnp.dot(y, w_ref[...],
                           preferred_element_type=jnp.float32).astype(o_ref.dtype)


def _graph_conv_tiled(A, X, W_p, *, compute_dtype, out_dtype, tile_n, vmem_limit):
    B, N, _ = A.shape
    Fin = X.shape[-1]
    Fout_p = W_p.shape[-1]

    # Pad N up to a multiple of 128; pick the largest 128-multiple tile that
    # divides Np and is <= tile_n (so padding stays < 128 rows).
    Np = _round_up(N, 128)
    tile_cap = max(128, _round_up(min(tile_n, Np), 128))
    tile = 128
    t = 256
    while t <= tile_cap:
        if Np % t == 0:
            tile = t
        t += 128
    tm = tk = tile

    if Np != N:
        # Zero padding is safe: padded columns contribute 0 to every dot product
        # and padded output rows are sliced off below.
        A = jnp.pad(A, ((0, 0), (0, Np - N), (0, Np - N)))
        X = jnp.pad(X, ((0, 0), (0, Np - N), (0, 0)))

    # ---- Pass 1: d = (colsum(A) + 1e-5) ** -0.5, lane-dense (B, 1, Np).
    # Row tile decoupled from tile_n; block capped at ~8 MiB so the pipelined
    # pair stays well under v7x's 64 MiB VMEM even for large Np.
    budget = 8 * 1024 * 1024
    tr = 256 if (Np % 256 == 0) else 128
    while tr > 8 and tr * Np * 4 > budget:
        tr //= 2
    tr = min(tr, Np)

    d = pl.pallas_call(
        _colsum_rsqrt_kernel,
        out_shape=jax.ShapeDtypeStruct((B, 1, Np), jnp.float32),
        grid_spec=pltpu.PrefetchScalarGridSpec(
            num_scalar_prefetch=0,
            grid=(B, Np // tr),
            in_specs=[pl.BlockSpec((1, tr, Np), lambda b, r: (b, r, 0))],
            out_specs=pl.BlockSpec((1, 1, Np), lambda b, r: (b, 0, 0)),
        ),
        compiler_params=pltpu.CompilerParams(
            dimension_semantics=("parallel", "arbitrary"),
            vmem_limit_bytes=vmem_limit,
        ),
    )(A)

    xw_first = Fout_p <= _round_up(Fin, 128)

    if xw_first:
        # ---- Pass 1b: Y = (d ⊙ X) @ W, lane-dense, stored in compute_dtype.
        y = pl.pallas_call(
            functools.partial(_scaled_xw_kernel, compute_dtype=compute_dtype),
            out_shape=jax.ShapeDtypeStruct((B, Np, Fout_p), compute_dtype),
            grid_spec=pltpu.PrefetchScalarGridSpec(
                num_scalar_prefetch=0,
                grid=(B, Np // tile),
                in_specs=[
                    pl.BlockSpec((1, 1, tile), lambda b, r: (b, 0, r)),
                    pl.BlockSpec((1, tile, Fin), lambda b, r: (b, r, 0)),
                    pl.BlockSpec((Fin, Fout_p), lambda b, r: (0, 0)),
                ],
                out_specs=pl.BlockSpec((1, tile, Fout_p), lambda b, r: (b, r, 0)),
            ),
            compiler_params=pltpu.CompilerParams(
                dimension_semantics=("parallel", "parallel"),
                vmem_limit_bytes=vmem_limit,
            ),
        )(d, X, W_p)

        # ---- Pass 2: out = d_i ⊙ (A @ Y) with a lane-dense (tm, Fout_p) acc.
        kernel = functools.partial(_graph_conv_tiled_kernel_xw,
                                   compute_dtype=compute_dtype)
        x_p = pl.pallas_call(
            kernel,
            out_shape=jax.ShapeDtypeStruct((B, Np, Fout_p), out_dtype),
            grid_spec=pltpu.PrefetchScalarGridSpec(
                num_scalar_prefetch=0,
                grid=(B, Np // tm, Np // tk),
                in_specs=[
                    pl.BlockSpec((1, 1, Np), lambda b, i, k: (b, 0, 0)),       # d resident
                    pl.BlockSpec((1, tm, tk), lambda b, i, k: (b, i, k)),      # A tile
                    pl.BlockSpec((1, tk, Fout_p), lambda b, i, k: (b, k, 0)),  # Y tile
                ],
                out_specs=pl.BlockSpec((1, tm, Fout_p), lambda b, i, k: (b, i, 0)),
                scratch_shapes=[pltpu.VMEM((tm, Fout_p), jnp.float32)],
            ),
            compiler_params=pltpu.CompilerParams(
                dimension_semantics=("parallel", "parallel", "arbitrary"),
                vmem_limit_bytes=vmem_limit,
            ),
        )(d, A, y)
    else:
        # ---- Pass 2: (d_i ⊙ (A @ (d_k ⊙ X))) @ W with a (tm, Fin) acc.
        kernel = functools.partial(_graph_conv_tiled_kernel,
                                   compute_dtype=compute_dtype)
        x_p = pl.pallas_call(
            kernel,
            out_shape=jax.ShapeDtypeStruct((B, Np, Fout_p), out_dtype),
            grid_spec=pltpu.PrefetchScalarGridSpec(
                num_scalar_prefetch=0,
                grid=(B, Np // tm, Np // tk),
                in_specs=[
                    pl.BlockSpec((1, 1, Np), lambda b, i, k: (b, 0, 0)),       # d resident
                    pl.BlockSpec((1, tm, tk), lambda b, i, k: (b, i, k)),      # A tile
                    pl.BlockSpec((1, tk, Fin), lambda b, i, k: (b, k, 0)),     # X tile
                    pl.BlockSpec((Fin, Fout_p), lambda b, i, k: (0, 0)),       # W
                ],
                out_specs=pl.BlockSpec((1, tm, Fout_p), lambda b, i, k: (b, i, 0)),
                scratch_shapes=[pltpu.VMEM((tm, Fin), jnp.float32)],
            ),
            compiler_params=pltpu.CompilerParams(
                dimension_semantics=("parallel", "parallel", "arbitrary"),
                vmem_limit_bytes=vmem_limit,
            ),
        )(d, A, X, W_p)

    return x_p[:, :N, :] if Np != N else x_p


# ----------------------------------------------------------------------------
# Wrapper
# ----------------------------------------------------------------------------
def graph_conv(A, X, W, *, compute_dtype=jnp.bfloat16, max_simple_n=1024, tile_n=512):
    """GraphConv forward. A: (B,N,N), X: (B,N,Fin), W: (Fin,Fout). Returns (A, x)."""
    B, N, _ = A.shape
    Fout = W.shape[-1]
    out_dtype = X.dtype
    vmem_limit = _vmem_limit_bytes()

    # Lane-dense output: pad Fout up to a multiple of 128 with zero columns.
    Fout_p = _round_up(max(Fout, 1), 128)
    W_p = W if Fout_p == Fout else jnp.pad(W, ((0, 0), (0, Fout_p - Fout)))
    W_p = W_p.astype(compute_dtype)

    if N <= max_simple_n:
        x_p = _graph_conv_simple(A, X, W_p, compute_dtype=compute_dtype,
                                 out_dtype=out_dtype, vmem_limit=vmem_limit)
    else:
        x_p = _graph_conv_tiled(A, X, W_p, compute_dtype=compute_dtype,
                                out_dtype=out_dtype, tile_n=tile_n,
                                vmem_limit=vmem_limit)

    x = x_p[..., :Fout] if Fout_p != Fout else x_p
    return A, x


def xavier_uniform(key, fan_in, fan_out, dtype=jnp.float32):
    a = (6.0 / (fan_in + fan_out)) ** 0.5
    return jax.random.uniform(key, (fan_in, fan_out), dtype, minval=-a, maxval=a)


def _reference(A, X, W):
    d = jax.lax.rsqrt(jnp.sum(A, axis=1) + 1e-05)
    A_hat = d[:, :, None] * A * d[:, None, :]
    return jnp.einsum("bij,bjf,fo->bio", A_hat, X, W)


def _make_inputs(key, B, N, Fin, Fout):
    k_a, k_x, k_w = jax.random.split(key, 3)
    A_raw = jax.random.uniform(k_a, (B, N, N), jnp.float32)
    A = (A_raw + jnp.swapaxes(A_raw, 1, 2)) * 0.5 + jnp.eye(N, dtype=jnp.float32)[None]
    X = jax.random.normal(k_x, (B, N, Fin), jnp.float32)
    W = xavier_uniform(k_w, Fin, Fout)
    return A, X, W


if __name__ == "__main__":
    key = jax.random.PRNGKey(0)
    ks = jax.random.split(key, 4)

    # 1) Primary small shapes, bf16 compute — simple path, xw-first (Fin < 128).
    A, X, W = _make_inputs(ks[0], B=2, N=16, Fin=8, Fout=32)
    A_out, x_bf16 = graph_conv(A, X, W)
    jax.block_until_ready(x_bf16)
    x_ref = _reference(A, X, W)
    assert jnp.allclose(x_bf16, x_ref, atol=5e-2, rtol=5e-2), "bf16 path mismatch"
    assert jnp.array_equal(A_out, A)

    # 2) Same shapes, f32 compute -> tight tolerance.
    _, x_f32 = graph_conv(A, X, W, compute_dtype=jnp.float32)
    jax.block_until_ready(x_f32)
    assert jnp.allclose(x_f32, x_ref, atol=1e-4, rtol=1e-4), "f32 path mismatch"

    # 3) Simple path, non-xw ordering (Fout_p > round_up(Fin,128)), prime B
    #    exercising the batch-padding logic.
    A3, X3, W3 = _make_inputs(ks[1], B=5, N=16, Fin=128, Fout=256)
    _, x3 = graph_conv(A3, X3, W3)
    jax.block_until_ready(x3)
    assert jnp.allclose(x3, _reference(A3, X3, W3), atol=5e-2, rtol=5e-2), \
        "simple non-xw path mismatch"

    # 4) Tiled xw path (colsum + Y precompute + accumulating A@Y), with N
    #    padding (200 -> 256) and a real k-reduction (tile 128).
    A4, X4, W4 = _make_inputs(ks[2], B=2, N=200, Fin=8, Fout=32)
    _, x4 = graph_conv(A4, X4, W4, max_simple_n=64, tile_n=128)
    jax.block_until_ready(x4)
    assert jnp.allclose(x4, _reference(A4, X4, W4), atol=5e-2, rtol=5e-2), \
        "tiled xw path mismatch"

    # 5) Tiled non-xw path (wide Fout, Fin >= 128).
    A5, X5, W5 = _make_inputs(ks[3], B=1, N=256, Fin=128, Fout=256)
    _, x5 = graph_conv(A5, X5, W5, max_simple_n=64, tile_n=128)
    jax.block_until_ready(x5)
    assert jnp.allclose(x5, _reference(A5, X5, W5), atol=5e-2, rtol=5e-2), \
        "tiled non-xw path mismatch"

    print("KERNEL_OK")
</pallas_src>

<mosaic_0001>
module attributes {stable_mosaic.version = 11 : i64} {
  func.func @_graph_conv_small_kernel(%arg0: i32, %arg1: memref<1x16x16xf32, #tpu.memory_space<vmem>>, %arg2: memref<1x16x8xf32, #tpu.memory_space<vmem>>, %arg3: memref<8x128xbf16, #tpu.memory_space<vmem>>, %arg4: memref<1x16x128xf32, #tpu.memory_space<vmem>>) attributes {dimension_semantics = [#tpu.dimension_semantics<parallel>], iteration_bounds = array<i64: 2>, scalar_prefetch = 0 : i64, scratch_operands = 0 : i64, tpu.core_type = #tpu.core_type<tc>, window_params = [{transform_indices = @transform_0, window_bounds = array<i64: 1, 16, 16>}, {transform_indices = @transform_1, window_bounds = array<i64: 1, 16, 8>}, {pipeline_mode = #tpu.pipeline_mode<synchronous>, transform_indices = @transform_2, window_bounds = array<i64: 8, 128>}, {transform_indices = @transform_3, window_bounds = array<i64: 1, 16, 128>}]} {
    %c0 = arith.constant 0 : index
    %c0_0 = arith.constant 0 : index
    %c0_1 = arith.constant 0 : index
    %0 = vector.load %arg1[%c0, %c0_0, %c0_1] : memref<1x16x16xf32, #tpu.memory_space<vmem>>, vector<1x16x16xf32>
    %c0_2 = arith.constant 0 : index
    %c0_3 = arith.constant 0 : index
    %c0_4 = arith.constant 0 : index
    %1 = vector.load %arg2[%c0_2, %c0_3, %c0_4] : memref<1x16x8xf32, #tpu.memory_space<vmem>>, vector<1x16x8xf32>
    %c0_5 = arith.constant 0 : index
    %c0_6 = arith.constant 0 : index
    %2 = vector.load %arg3[%c0_5, %c0_6] : memref<8x128xbf16, #tpu.memory_space<vmem>>, vector<8x128xbf16>
    %cst = arith.constant dense<0.000000e+00> : vector<1x16xf32>
    %3 = vector.multi_reduction <add>, %0, %cst [1] : vector<1x16x16xf32> to vector<1x16xf32>
    %4 = vector.shape_cast %3 : vector<1x16xf32> to vector<1x1x16xf32>
    %cst_7 = arith.constant 9.99999974E-6 : f32
    %5 = vector.broadcast %cst_7 : f32 to vector<1x1x16xf32>
    %6 = arith.addf %4, %5 : vector<1x1x16xf32>
    %7 = math.rsqrt %6 : vector<1x1x16xf32>
    %8 = tpu.transpose %7, [0, 2, 1] : vector<1x1x16xf32> -> vector<1x16x1xf32>
    %9 = arith.truncf %0 : vector<1x16x16xf32> to vector<1x16x16xbf16>
    %10 = arith.truncf %1 : vector<1x16x8xf32> to vector<1x16x8xbf16>
    %11 = vector.shape_cast %10 : vector<1x16x8xbf16> to vector<16x8xbf16>
    %cst_8 = arith.constant dense<0.000000e+00> : vector<16x128xf32>
    %12 = tpu.matmul %11, %2, %cst_8 {dimension_numbers = #tpu.dot_dimension_numbers<[1], [0], [0], [1], [0, 0, 1, 1], [], []>} : vector<16x8xbf16>, vector<8x128xbf16>, vector<16x128xf32> -> vector<16x128xf32>
    %13 = vector.shape_cast %12 : vector<16x128xf32> to vector<1x16x128xf32>
    %14 = vector.broadcast %8 : vector<1x16x1xf32> to vector<1x16x128xf32>
    %15 = arith.mulf %13, %14 : vector<1x16x128xf32>
    %16 = arith.truncf %15 : vector<1x16x128xf32> to vector<1x16x128xbf16>
    "tpu.trace_start"() <{level = 10 : i32, message = "bij,bjf->bif"}> : () -> ()
    %cst_9 = arith.constant dense<0.000000e+00> : vector<1x16x128xf32>
    %17 = tpu.matmul %9, %16, %cst_9 {dimension_numbers = #tpu.dot_dimension_numbers<[2], [1], [1], [2], [0, 0, 0, 1, 1, 2], [0], [0]>} : vector<1x16x16xbf16>, vector<1x16x128xbf16>, vector<1x16x128xf32> -> vector<1x16x128xf32>
    "tpu.trace_stop"() : () -> ()
    %18 = vector.broadcast %8 : vector<1x16x1xf32> to vector<1x16x128xf32>
    %19 = arith.mulf %17, %18 : vector<1x16x128xf32>
    %c0_10 = arith.constant 0 : index
    %c0_11 = arith.constant 0 : index
    %c0_12 = arith.constant 0 : index
    %20 = vector.load %arg4[%c0_10, %c0_11, %c0_12] : memref<1x16x128xf32, #tpu.memory_space<vmem>>, vector<1x16x128xf32>
    tpu.vector_store %arg4[%c0_10, %c0_11, %c0_12], %19 {strides = array<i32>} : memref<1x16x128xf32, #tpu.memory_space<vmem>>, vector<1x16x128xf32>,
    return
  }
  func.func @transform_0(%arg0: i32) -> (i32, i32, i32) {
    %c0_i32 = arith.constant 0 : i32
    %c0_i32_0 = arith.constant 0 : i32
    %c0_i32_1 = arith.constant 0 : i32
    return %arg0, %c0_i32, %c0_i32_0 : i32, i32, i32
  }
  func.func @transform_1(%arg0: i32) -> (i32, i32, i32) {
    %c0_i32 = arith.constant 0 : i32
    %c0_i32_0 = arith.constant 0 : i32
    %c0_i32_1 = arith.constant 0 : i32
    return %arg0, %c0_i32, %c0_i32_0 : i32, i32, i32
  }
  func.func @transform_2(%arg0: i32) -> (i32, i32) {
    %c0_i32 = arith.constant 0 : i32
    %c0_i32_0 = arith.constant 0 : i32
    %c0_i32_1 = arith.constant 0 : i32
    return %c0_i32, %c0_i32_0 : i32, i32
  }
  func.func @transform_3(%arg0: i32) -> (i32, i32, i32) {
    %c0_i32 = arith.constant 0 : i32
    %c0_i32_0 = arith.constant 0 : i32
    %c0_i32_1 = arith.constant 0 : i32
    return %arg0, %c0_i32, %c0_i32_0 : i32, i32, i32
  }
}

</mosaic_0001>

<llo_original>
// kernel: tpu_custom_call.1
$region0: #{tpu_custom_call.1}
  #allocation0 [shape = 'u32[]', space=smem, size = 0x4, offset = 0x4, fixed_abs, tag = 'smem constant byte address 0x4 - core index']
  #allocation1 [shape = 'u32[144,128]{1,0:T(1,128)}', space=vmem, size = 0x12000, scoped, tag = 'internal scratch']
  %s0 = inlined_call_operand.vmem [shape: f32[2,16,16], index: 0, kind: input, shape index: {}]
  %s1 = inlined_call_operand.vmem [shape: f32[2,16,8], index: 1, kind: input, shape index: {}]
  %s2 = inlined_call_operand.vmem [shape: bf16[8,128], index: 2, kind: input, shape index: {}]
  %s3 = inlined_call_operand.hbm [shape: f32[2,16,128], index: 3, kind: output, shape index: {}]
  %s4 = sld [smem:[#allocation0]]
  $region45: #{tpu_custom_call.1} parent=0
    _
  %s6 = ssub.s32 1, %s4
  %s7 = scalar_select 0, %s6, %s4
  $region1: #{tpu_custom_call.1} parent=0
    #allocation2 [shape = 'u8[16384]{0}', space=vmem, size = 0x4000, scoped, tag = 'output window, operand 0']
    #allocation3 [shape = 's32[2]{0}', space=sflag, size = 0x8, scoped, tag = 'scoped memory for tpu_custom_call.1']
    %8 = vsyncpa [#allocation3], 0
    %s9 = scalar_lea.sflag [#allocation3], 1
    %10 = vsyncpa %s9, 0
    loop: start=0, step=1, limit=4
    $region2: #{tpu_custom_call.1} parent=1 // loop_pre_header
      _
    $region3: #{tpu_custom_call.1} parent=1 // loop_header
      %s12 = sphi 0, %s16
      %p13 = scmp.ge.s32.totalorder %s12, 4
      %s22 = sphi 0, %s24
      %s25 = sphi 0, %s22
      %s26 = sphi 0, %s25
      %s42 = sphi 0, %s26
      %s48 = sphi 0, %s50
      %s51 = sphi 0, %s48
      %s52 = sphi 0, %s51
      %s68 = sphi 0, %s52
      %s72 = sphi 0, %s72
      %s74 = sphi 0, %s72
      %s75 = sphi 0, %s74
      %s89 = sphi 0, %s75
      %s95 = sphi 0, %s97
      %s98 = sphi 0, %s95
      %s99 = sphi 0, %s98
      %s115 = sphi 0, %s99
    $region4: #{tpu_custom_call.1} parent=1 // loop_header_branch
      %15 = sbr.rel (%p13) target = $region8
    $region5: #{tpu_custom_call.1} parent=1 // loop_body
      %s17 = ssub.s32 %s12, 1
      %s18 = ssub.s32 %s12, 2
      %s19 = sadd.s32 %s12, 1
      %s20 = ssub.s32 %s12, %s19
      %p21 = scmp.eq.s32.totalorder %s20, 0
      %s23 = sadd.s32 %s22, 1
      %s24 = scalar_select %p21, %s22, %s23
      %p27 = pneg %p21
      %p28 = scmp.eq.s32.totalorder %s12, 1
      %p29 = por %p27, %p28
      %p30 = scmp.ne.s32.totalorder %s22, %s25
      %p31 = scmp.eq.s32.totalorder %s12, 0
      %p32 = por %p30, %p31
      %p33 = scmp.ne.s32.totalorder %s22, %s25
      %p34 = scmp.eq.s32.totalorder %s17, 1
      %p35 = por %p33, %p34
      %p36 = scmp.ne.s32.totalorder %s25, %s26
      %p37 = scmp.eq.s32.totalorder %s17, 0
      %p38 = por %p36, %p37
      %p39 = scmp.ne.s32.totalorder %s25, %s26
      %p40 = scmp.eq.s32.totalorder %s18, 1
      %p41 = por %p39, %p40
      %p43 = scmp.ne.s32.totalorder %s26, %s42
      %p44 = scmp.eq.s32.totalorder %s18, 0
      %p45 = por %p43, %p44
      %s46 = ssub.s32 %s12, %s19
      %p47 = scmp.eq.s32.totalorder %s46, 0
      %s49 = sadd.s32 %s48, 1
      %s50 = scalar_select %p47, %s48, %s49
      %p53 = pneg %p47
      %p54 = scmp.eq.s32.totalorder %s12, 1
      %p55 = por %p53, %p54
      %p56 = scmp.ne.s32.totalorder %s48, %s51
      %p57 = scmp.eq.s32.totalorder %s12, 0
      %p58 = por %p56, %p57
      %p59 = scmp.ne.s32.totalorder %s48, %s51
      %p60 = scmp.eq.s32.totalorder %s17, 1
      %p61 = por %p59, %p60
      %p62 = scmp.ne.s32.totalorder %s51, %s52
      %p63 = scmp.eq.s32.totalorder %s17, 0
      %p64 = por %p62, %p63
      %p65 = scmp.ne.s32.totalorder %s51, %s52
      %p66 = scmp.eq.s32.totalorder %s18, 1
      %p67 = por %p65, %p66
      %p69 = scmp.ne.s32.totalorder %s52, %s68
      %p70 = scmp.eq.s32.totalorder %s18, 0
      %p71 = por %p69, %p70
      %s73 = sadd.s32 %s72, 1
      %p76 = scmp.eq.s32.totalorder %s12, 1
      %p77 = scmp.ne.s32.totalorder %s72, %s74
      %p78 = scmp.eq.s32.totalorder %s12, 0
      %p79 = por %p77, %p78
      %p80 = scmp.ne.s32.totalorder %s72, %s74
      %p81 = scmp.eq.s32.totalorder %s17, 1
      %p82 = por %p80, %p81
      %p83 = scmp.ne.s32.totalorder %s74, %s75
      %p84 = scmp.eq.s32.totalorder %s17, 0
      %p85 = por %p83, %p84
      %p86 = scmp.ne.s32.totalorder %s74, %s75
      %p87 = scmp.eq.s32.totalorder %s18, 1
      %p88 = por %p86, %p87
      %p90 = scmp.ne.s32.totalorder %s75, %s89
      %p91 = scmp.eq.s32.totalorder %s18, 0
      %p92 = por %p90, %p91
      %s93 = ssub.s32 %s12, %s19
      %p94 = scmp.eq.s32.totalorder %s93, 0
      %s96 = sadd.s32 %s95, 1
      %s97 = scalar_select %p94, %s95, %s96
      %p100 = pneg %p94
      %p101 = scmp.eq.s32.totalorder %s12, 1
      %p102 = por %p100, %p101
      %p103 = scmp.ne.s32.totalorder %s95, %s98
      %p104 = scmp.eq.s32.totalorder %s12, 0
      %p105 = por %p103, %p104
      %p106 = scmp.ne.s32.totalorder %s95, %s98
      %p107 = scmp.eq.s32.totalorder %s17, 1
      %p108 = por %p106, %p107
      %p109 = scmp.ne.s32.totalorder %s98, %s99
      %p110 = scmp.eq.s32.totalorder %s17, 0
      %p111 = por %p109, %p110
      %p112 = scmp.ne.s32.totalorder %s98, %s99
      %p113 = scmp.eq.s32.totalorder %s18, 1
      %p114 = por %p112, %p113
      %p116 = scmp.ne.s32.totalorder %s99, %s115
      %p117 = scmp.eq.s32.totalorder %s18, 0
      %p118 = por %p116, %p117
      %p119 = scmp.le.s32.totalorder 1, %s12
      %p120 = scmp.lt.s32.totalorder %s12, 3
      %p121 = pnand %p119, %p120
      %p122 = pneg %p121
      // Predicated region
      $region9: #{tpu_custom_call.1} parent=5 // pred_check
        _
      $region10: #{tpu_custom_call.1} parent=5 // pred_check_branch
        %124 = sbr.rel (%p121) target = $region12
      $region11: #{tpu_custom_call.1} parent=5 // pred_region
        %s125 = ssub.s32 %s12, 1
        // Predicated region
        $region13: #{tpu_custom_call.1} parent=11 // pred_check
          %p126 = pneg %p85
        $region14: #{tpu_custom_call.1} parent=11 // pred_check_branch
          %128 = sbr.rel (%p126) target = $region16
        $region15: #{tpu_custom_call.1} parent=11 // pred_region
          _
        $region16: #{tpu_custom_call.1} parent=11 // pred_fallthru
          _
      $region12: #{tpu_custom_call.1} parent=5 // pred_fallthru
        _
      %p129 = scmp.lt.s32.totalorder %s12, 2
      // Predicated region
      $region17: #{tpu_custom_call.1} parent=5 // pred_check
        %p130 = pneg %p129
      $region18: #{tpu_custom_call.1} parent=5 // pred_check_branch
        %132 = sbr.rel (%p130) target = $region20
      $region19: #{tpu_custom_call.1} parent=5 // pred_region
        // Predicated region
        $region21: #{tpu_custom_call.1} parent=19 // pred_check
          %p133 = pneg %p32
        $region22: #{tpu_custom_call.1} parent=19 // pred_check_branch
          %135 = sbr.rel (%p133) target = $region24
        $region23: #{tpu_custom_call.1} parent=19 // pred_region
          %p136 = scmp.lt.s32.totalorder %s12, 1
          %s137 = scalar_select %p136, %s12, 1
          %s138 = smul.addr %s137, 2
          %s139 = smul.addr %s138, 8
          %s140 = scalar_lea.vmem %s0, %s139
        $region24: #{tpu_custom_call.1} parent=19 // pred_fallthru
          _
        // Predicated region
        $region25: #{tpu_custom_call.1} parent=19 // pred_check
          %p141 = pneg %p58
        $region26: #{tpu_custom_call.1} parent=19 // pred_check_branch
          %143 = sbr.rel (%p141) target = $region28
        $region27: #{tpu_custom_call.1} parent=19 // pred_region
          %p144 = scmp.lt.s32.totalorder %s12, 1
          %s145 = scalar_select %p144, %s12, 1
          %s146 = smul.addr %s145, 2
          %s147 = smul.addr %s146, 8
          %s148 = scalar_lea.vmem %s1, %s147
        $region28: #{tpu_custom_call.1} parent=19 // pred_fallthru
          _
      $region20: #{tpu_custom_call.1} parent=5 // pred_fallthru
        _
      %p149 = scmp.le.s32.totalorder 1, %s12
      %p150 = scmp.lt.s32.totalorder %s12, 3
      %p151 = pnand %p149, %p150
      %p152 = pneg %p151
      // Predicated region
      $region29: #{tpu_custom_call.1} parent=5 // pred_check
        _
      $region30: #{tpu_custom_call.1} parent=5 // pred_check_branch
        %154 = sbr.rel (%p151) target = $region32
      $region31: #{tpu_custom_call.1} parent=5 // pred_region
        %s155 = ssub.s32 %s12, 1
        %p156 = scmp.lt.s32.totalorder %s17, 1
        %s157 = scalar_select %p156, %s17, 1
        %s158 = smul.addr %s157, 2
        %s159 = smul.addr %s158, 8
        %s160 = scalar_lea.vmem %s0, %s159
        %p161 = pneg %p38
        %p162 = pneg %p35
        %p163 = scmp.lt.s32.totalorder %s17, 1
        %s164 = scalar_select %p163, %s17, 1
        %s165 = smul.addr %s164, 2
        %s166 = smul.addr %s165, 8
        %s167 = scalar_lea.vmem %s1, %s166
        %p168 = pneg %p64
        %p169 = pneg %p61
        %p170 = pneg %p85
        %p171 = pneg %p82
        %p172 = pneg %p111
        %p173 = pneg %p108
        %s174 = sand.u32 %s98, 1
        %s175 = scalar_lea.sflag [#allocation3], %s174
        %s176 = sand.u32 %s98, 1
        %s177 = smul.addr %s176, 16
        %s178 = scalar_lea.vmem [#allocation2], %s177
        %p179 = scmp.lt.s32.totalorder %s17, 1
        %s180 = scalar_select %p179, %s17, 1
        %s181 = smul.addr %s180, 2
        %s182 = smul.addr %s181, 8
        %s183 = scalar_lea.vmem %s0, %s182
        %p184 = scmp.lt.s32.totalorder %s17, 1
        %s185 = scalar_select %p184, %s17, 1
        %s186 = smul.addr %s185, 2
        %s187 = smul.addr %s186, 8
        %s188 = scalar_lea.vmem %s1, %s187
        %v190 = vld [vmem:[%s183] sm:$0xff]
        %v191 = vld [vmem:[%s183 + $0x8] sm:$0xff]
        %v192 = vld [vmem:[%s188] sm:$0xff]
        %v193 = vld [vmem:[%s188 + $0x8] sm:$0xff]
        %v194 = vld [vmem:[%s2] sm:$0xf]
        %vm195 = vcmask 130048
        %v196 = vsel %vm195, %v190, 0.0
        %v197 = vsel %vm195, %v191, 0.0
        %v198 = vadd.f32 %v196, %v197
        %v199 = vrot.slane %v198, 4
        %v200 = vadd.f32 %v198, %v199
        %v201 = vrot.slane %v200, 2
        %v202 = vadd.f32 %v200, %v201
        %v203 = vrot.slane %v202, 1
        %v204 = vadd.f32 %v202, %v203
        %v205 = vadd.f32 %v204, 1e-05
        %v206 = vrsqrt.pop %v205
        %207 = vxpose.xlu0.b32.start [1/16] %v206, 128
        %208 = vxpose.xlu0.b32.cont [2/16] 0.0, 128
        %209 = vxpose.xlu0.b32.cont [3/16] 0.0, 128
        %210 = vxpose.xlu0.b32.cont [4/16] 0.0, 128
        %211 = vxpose.xlu0.b32.cont [5/16] 0.0, 128
        %212 = vxpose.xlu0.b32.cont [6/16] 0.0, 128
        %213 = vxpose.xlu0.b32.cont [7/16] 0.0, 128
        %214 = vxpose.xlu0.b32.cont [8/16] 0.0, 128
        %215 = vxpose.xlu0.b32.cont [9/16] 0.0, 128
        %216 = vxpose.xlu0.b32.cont [10/16] 0.0, 128
        %217 = vxpose.xlu0.b32.cont [11/16] 0.0, 128
        %218 = vxpose.xlu0.b32.cont [12/16] 0.0, 128
        %219 = vxpose.xlu0.b32.cont [13/16] 0.0, 128
        %220 = vxpose.xlu0.b32.cont [14/16] 0.0, 128
        %221 = vxpose.xlu0.b32.cont [15/16] 0.0, 128
        %222 = vxpose.xlu0.b32.end [16/16] 0.0, 128
        %v223 = vpop.trf.xlu0
        %v224 = vpop.trf.xlu0
        %v225 = vpop.trf.xlu0
        %v226 = vpop.trf.xlu0
        %v227 = vpop.trf.xlu0
        %v228 = vpop.trf.xlu0
        %v229 = vpop.trf.xlu0
        %v230 = vpop.trf.xlu0
        %v231 = vpop.trf.xlu0
        %v232 = vpop.trf.xlu0
        %v233 = vpop.trf.xlu0
        %v234 = vpop.trf.xlu0
        %v235 = vpop.trf.xlu0
        %v236 = vpop.trf.xlu0
        %v237 = vpop.trf.xlu0
        %v238 = vpop.trf.xlu0
        %v239 = vpack.c.bf16 %v191, %v190
        %v240 = vpack.c.bf16 %v193, %v192
        %vm241 = vcmask 64512
        %v243 = vsel %vm241, %v240, 0
        %vm245 = vcmask 1043456
        %v247 = vsel %vm245, %v194, 0
        %249 = vmatprep.subr.bf16.mxu0 0
        %250 = vmatpush1.bf16.msra.mxu0 %v247
        %251 = vmatprep.subr.bf16.mxu0 0
        %252 = vmatpush1.bf16.msra.mxu0 0
        %253 = vmatprep.subr.bf16.mxu0 0
        %254 = vmatpush1.bf16.msra.mxu0 0
        %255 = vmatprep.subr.bf16.mxu0 0
        %256 = vmatpush1.bf16.msra.mxu0 0
        %257 = vmatprep.subr.bf16.mxu0 0
        %258 = vmatpush1.bf16.msra.mxu0 0
        %259 = vmatprep.subr.bf16.mxu0 0
        %260 = vmatpush1.bf16.msra.mxu0 0
        %261 = vmatprep.subr.bf16.mxu0 0
        %262 = vmatpush1.bf16.msra.mxu0 0
        %263 = vmatprep.subr.bf16.mxu0 0
        %264 = vmatpush1.bf16.msra.mxu0 0
        %265 = vmatprep.subr.bf16.mxu0 0
        %266 = vmatpush1.bf16.msra.mxu0 0
        %267 = vmatprep.subr.bf16.mxu0 0
        %268 = vmatpush1.bf16.msra.mxu0 0
        %269 = vmatprep.subr.bf16.mxu0 0
        %270 = vmatpush1.bf16.msra.mxu0 0
        %271 = vmatprep.subr.bf16.mxu0 0
        %272 = vmatpush1.bf16.msra.mxu0 0
        %273 = vmatprep.subr.bf16.mxu0 0
        %274 = vmatpush1.bf16.msra.mxu0 0
        %275 = vmatprep.subr.bf16.mxu0 0
        %276 = vmatpush1.bf16.msra.mxu0 0
        %277 = vmatprep.subr.bf16.mxu0 0
        %278 = vmatpush1.bf16.msra.mxu0 0
        %279 = vmatprep.subr.bf16.mxu0 0
        %280 = vmatpush1.bf16.msra.mxu0 0
        %281 = vmatprep.mubr.bf16.mxu0 0
        %282 = vmatmul.mubr.bf16.gmra.mrb[0].mxu0 %v243
        %v283 = vpop.f32.mrb[0].mxu0
        %v284 = vadd.f32 0.0, %v283
        %v285 = vpop.f32.mrb[0].mxu0
        %v286 = vpop.f32.mrb[0].mxu0
        %v287 = vadd.f32 0.0, %v286
        %v288 = vpop.f32.mrb[0].mxu0
        %289 = vdwg.mxu0
        %291 = vset.pattern.permute.xlu0 0
        %292 = vperm.xlu0 %291, %v223
        %v293 = vpop.permute.xlu0 %292
        %296 = vset.pattern.permute.xlu0 0
        %297 = vperm.xlu0 %296, %v224
        %v298 = vpop.permute.xlu0 %297
        %v300 = vmul.f32 %v284, %v293
        %v301 = vmul.f32 %v287, %v298
        %v302 = vpack.c.bf16 %v301, %v300
        %v304 = vsel %vm195, %v239, 0
        %306 = vmatprep.subr.bf16.mxu0 0
        %307 = vmatpush1.bf16.msra.mxu0 %v302
        %308 = vmatprep.subr.bf16.mxu0 0
        %309 = vmatpush1.bf16.msra.mxu0 0
        %310 = vmatprep.subr.bf16.mxu0 0
        %311 = vmatpush1.bf16.msra.mxu0 0
        %312 = vmatprep.subr.bf16.mxu0 0
        %313 = vmatpush1.bf16.msra.mxu0 0
        %314 = vmatprep.subr.bf16.mxu0 0
        %315 = vmatpush1.bf16.msra.mxu0 0
        %316 = vmatprep.subr.bf16.mxu0 0
        %317 = vmatpush1.bf16.msra.mxu0 0
        %318 = vmatprep.subr.bf16.mxu0 0
        %319 = vmatpush1.bf16.msra.mxu0 0
        %320 = vmatprep.subr.bf16.mxu0 0
        %321 = vmatpush1.bf16.msra.mxu0 0
        %322 = vmatprep.subr.bf16.mxu0 0
        %323 = vmatpush1.bf16.msra.mxu0 0
        %324 = vmatprep.subr.bf16.mxu0 0
        %325 = vmatpush1.bf16.msra.mxu0 0
        %326 = vmatprep.subr.bf16.mxu0 0
        %327 = vmatpush1.bf16.msra.mxu0 0
        %328 = vmatprep.subr.bf16.mxu0 0
        %329 = vmatpush1.bf16.msra.mxu0 0
        %330 = vmatprep.subr.bf16.mxu0 0
        %331 = vmatpush1.bf16.msra.mxu0 0
        %332 = vmatprep.subr.bf16.mxu0 0
        %333 = vmatpush1.bf16.msra.mxu0 0
        %334 = vmatprep.subr.bf16.mxu0 0
        %335 = vmatpush1.bf16.msra.mxu0 0
        %336 = vmatprep.subr.bf16.mxu0 0
        %337 = vmatpush1.bf16.msra.mxu0 0
        %338 = vmatprep.mubr.bf16.mxu0 0
        %339 = vmatmul.mubr.bf16.gmra.mrb[0].mxu0 %v304
        %v340 = vpop.f32.mrb[0].mxu0
        %v341 = vadd.f32 0.0, %v340
        %v342 = vpop.f32.mrb[0].mxu0
        %v343 = vpop.f32.mrb[0].mxu0
        %v344 = vadd.f32 0.0, %v343
        %v345 = vpop.f32.mrb[0].mxu0
        %346 = vdwg.mxu0
        %v347 = vmul.f32 %v341, %v293
        %v348 = vmul.f32 %v344, %v298
        %349 = vst [vmem:[%s178] sm:$0xff] %v347
        %350 = vst [vmem:[%s178 + $0x8] sm:$0xff] %v348
        %s351 = sand.u32 %s98, 1
        %s352 = scalar_lea.sflag [#allocation3], %s351
        %s353 = sand.u32 %s98, 1
        %s354 = smul.addr %s353, 16
        %s355 = scalar_lea.vmem [#allocation2], %s354
        // Predicated region
        $region33: #{tpu_custom_call.1} parent=31 // pred_check
          %p356 = pneg %p108
        $region34: #{tpu_custom_call.1} parent=31 // pred_check_branch
          %358 = sbr.rel (%p356) target = $region36
        $region35: #{tpu_custom_call.1} parent=31 // pred_region
          %s360 = ssub.s32 256, 256
          %361 = vsyncadd %s352, %s360
          %s362 = smul.addr %s17, 2
          %s363 = smul.addr %s362, 128
          %s364 = scalar_lea.hbm %s3, %s363
          %s365 = sshll.u32 %s355, 4
          %s366 = int_to_ptr.vmem [resolvable:$true] %s365
          %371 = dma.vmem_to_hbm [thread:$0]  %s366, 256, %s364, %s352, 128, 128, 8
        $region36: #{tpu_custom_call.1} parent=31 // pred_fallthru
          _
      $region32: #{tpu_custom_call.1} parent=5 // pred_fallthru
        _
      %p372 = scmp.le.s32.totalorder 2, %s12
      // Predicated region
      $region37: #{tpu_custom_call.1} parent=5 // pred_check
        %p373 = pneg %p372
      $region38: #{tpu_custom_call.1} parent=5 // pred_check_branch
        %375 = sbr.rel (%p373) target = $region40
      $region39: #{tpu_custom_call.1} parent=5 // pred_region
        %s376 = ssub.s32 %s12, 2
        // Predicated region
        $region41: #{tpu_custom_call.1} parent=39 // pred_check
          %p377 = pneg %p114
        $region42: #{tpu_custom_call.1} parent=39 // pred_check_branch
          %379 = sbr.rel (%p377) target = $region44
        $region43: #{tpu_custom_call.1} parent=39 // pred_region
          %s380 = sand.u32 %s99, 1
          %s381 = scalar_lea.sflag [#allocation3], %s380
          %s382 = sand.u32 %s99, 1
          %s383 = smul.addr %s382, 16
          %s384 = scalar_lea.vmem [#allocation2], %s383
          %385 = dma.done %s381, 256
        $region44: #{tpu_custom_call.1} parent=39 // pred_fallthru
          _
      $region40: #{tpu_custom_call.1} parent=5 // pred_fallthru
        _
    $region6: #{tpu_custom_call.1} parent=1 // loop_footer
      %s16 = sadd.s32 1, %s12
    $region7: #{tpu_custom_call.1} parent=1 // loop_footer_branch
      %11 = sbr.rel target = $region3
    $region8: #{tpu_custom_call.1} parent=1 // loop_exit
      _
    %386 = vsyncpa [#allocation3], 1
    %s387 = scalar_lea.sflag [#allocation3], 1
    %388 = vsyncpa %s387, 1

</llo_original>
